<compile_context>
chip_gen: v7x
topology: tpu7x:2x2x1
jax: 0.10.0
libtpu: 0.0.40
codegen_flags: <defaults>
</compile_context>

<pallas_src>
import jax
import jax.numpy as jnp
from jax.experimental import pallas as pl
from jax.experimental.pallas import tpu as pltpu


# ----------------------------- Pallas kernel ------------------------------ #

def _conv1x1_kernel(w_ref, b_ref, x_ref, o_ref):
    # w_ref: (Cout, Cin)   b_ref: (Cout, 1)   x_ref: (Cin, tile_hw)
    # o_ref: (Cout, tile_hw)  -- lane-dense output (tile_hw % 128 == 0)
    y = jnp.dot(w_ref[...], x_ref[...], preferred_element_type=jnp.float32)
    o_ref[...] = (y + b_ref[...]).astype(o_ref.dtype)


def _round_up(x, m):
    return ((x + m - 1) // m) * m


def _choose_tile_hw(hw_pad, max_tile_hw, batch, min_steps=4):
    """Largest multiple-of-128 divisor of hw_pad that is <= max_tile_hw while
    keeping >= min_steps total grid steps (so v7x's two TensorCores each get
    >= 2 pipelined steps).  If min_steps is unreachable even with 128-wide
    tiles, fall back to the largest tile (fewest steps: best on v5e/v6e)."""
    n128 = hw_pad // 128
    divisors = [d for d in range(1, n128 + 1) if n128 % d == 0]
    cands = sorted((d * 128 for d in divisors if d * 128 <= max_tile_hw),
                   reverse=True)
    if not cands:
        cands = [128]
    for t in cands:                       # descending: largest tile first
        if batch * (hw_pad // t) >= min_steps:
            return t
    return cands[0]


def conv1x1_pallas(x_nchw, weight, bias, *, max_tile_hw=8192,
                   compute_dtype=jnp.bfloat16, out_dtype=None,
                   x_buffer_count=2):
    """1x1 Conv2d (NCHW in/out) as a Pallas channel matmul, no transposes.

    compute_dtype: dtype for X and W at the call boundary (f32 accumulation
      is always kept inside the kernel).  Default bf16 halves input traffic.
    out_dtype:     dtype of the stored result (default: same as x_nchw).
    x_buffer_count: >2 enables deeper pipelining on the X stream (v7x knob).
    """
    B, Cin, H, W = x_nchw.shape
    Cout = weight.shape[0]
    HW = H * W
    out_dtype = x_nchw.dtype if out_dtype is None else out_dtype

    # Free reshapes only (no data movement / transposes).
    x3d = x_nchw.reshape(B, Cin, HW)
    w2d = weight.reshape(Cout, Cin)
    b2d = bias.reshape(Cout, 1).astype(jnp.float32)

    if compute_dtype is not None:
        x3d = x3d.astype(compute_dtype)
        w2d = w2d.astype(compute_dtype)

    # Pad only to the lane width (128); tile_hw is a divisor of HW_pad so no
    # further padding (and no full padded copy of the activation) is needed.
    HW_pad = _round_up(HW, 128)
    if HW_pad != HW:
        x3d = jnp.pad(x3d, ((0, 0), (0, 0), (0, HW_pad - HW)))
    tile_hw = _choose_tile_hw(HW_pad, max_tile_hw, B)

    grid = (B, HW_pad // tile_hw)

    in_bytes = jnp.dtype(x3d.dtype).itemsize
    out_bytes = jnp.dtype(out_dtype).itemsize
    bytes_accessed = (
        x3d.size * in_bytes
        + w2d.size * in_bytes
        + b2d.size * 4
        + B * Cout * HW_pad * out_bytes
    )
    cost = pl.CostEstimate(
        flops=2 * B * Cin * Cout * HW_pad,
        transcendentals=0,
        bytes_accessed=bytes_accessed,
    )

    # Explicit VMEM budget with headroom for large tiles (works on all gens).
    vmem_need = (max(2, x_buffer_count) * Cin * tile_hw * in_bytes
                 + 2 * Cout * tile_hw * out_bytes
                 + Cout * Cin * in_bytes + Cout * 4)
    vmem_limit = int(max(32 << 20, min(4 * vmem_need, 96 << 20)))

    x_spec_kwargs = {}
    if x_buffer_count > 2:
        x_spec_kwargs["pipeline_mode"] = pl.Buffered(x_buffer_count)
    x_spec = pl.BlockSpec((None, Cin, tile_hw), lambda b, j: (b, 0, j),
                          **x_spec_kwargs)

    y3d = pl.pallas_call(
        _conv1x1_kernel,
        out_shape=jax.ShapeDtypeStruct((B, Cout, HW_pad), out_dtype),
        grid_spec=pltpu.PrefetchScalarGridSpec(
            num_scalar_prefetch=0,
            grid=grid,
            in_specs=[
                pl.BlockSpec((Cout, Cin), lambda b, j: (0, 0)),   # weight
                pl.BlockSpec((Cout, 1), lambda b, j: (0, 0)),     # bias
                x_spec,                                           # activation
            ],
            out_specs=pl.BlockSpec((None, Cout, tile_hw),
                                   lambda b, j: (b, 0, j)),
        ),
        compiler_params=pltpu.CompilerParams(
            dimension_semantics=("parallel", "parallel"),
            vmem_limit_bytes=vmem_limit),
        cost_estimate=cost,
    )(w2d, b2d, x3d)

    # Drop lane padding (padded columns carry bias; never exposed), back to NCHW.
    if HW_pad != HW:
        y3d = y3d[:, :, :HW]
    return y3d.reshape(B, Cout, H, W)


# ------------------------- Synthetic generator G -------------------------- #
# G is an arbitrary external module in the original code; here a small
# deterministic synthetic generator returning (out, adapt_out) with
# adapt_out having 64 channels (the adapter's required input channel count).
# TODO(synk): real G is an external nn.Module loaded from a checkpoint; only
# its (out, adapt_out) interface is reproduced here.  Once G's tail is known,
# fuse relu(z @ w_adp_tile) per HW tile into the conv kernel (or enable
# allow_input_fusion) to drop the (B,64,H,W) HBM round trip, which dominates
# the adapt-branch traffic at realistic H*W.

def make_synthetic_G_params(key, z_dim, H, W):
    k1, k2 = jax.random.split(key)
    w_out = jax.random.normal(k1, (z_dim, 3 * H * W), jnp.float32) * 0.05
    w_adp = jax.random.normal(k2, (z_dim, 64 * H * W), jnp.float32) * 0.05
    return {"w_out": w_out, "w_adp": w_adp, "H": H, "W": W}


def synthetic_G(params, z):
    B = z.shape[0]
    H, W = params["H"], params["W"]
    out = jnp.tanh(z @ params["w_out"]).reshape(B, 3, H, W)
    adapt_out = jax.nn.relu(z @ params["w_adp"]).reshape(B, 64, H, W)
    return out, adapt_out


# --------------------------- GeneratorWrapper ------------------------------ #

def make_adapter_params(key, vig_channels):
    # Deterministic stand-in for nn.Conv2d(64, vig_channels, 1) init.
    kw, kb = jax.random.split(key)
    fan_in = 64
    bound = 1.0 / jnp.sqrt(fan_in)
    weight = jax.random.uniform(kw, (vig_channels, 64, 1, 1), jnp.float32,
                                -bound, bound)
    bias = jax.random.uniform(kb, (vig_channels,), jnp.float32, -bound, bound)
    return {"weight": weight, "bias": bias}


def generator_wrapper_forward(G_params, adapter_params, z,
                              compute_dtype=jnp.bfloat16, out_dtype=None):
    out, adapt_out = synthetic_G(G_params, z)
    adapt_out = conv1x1_pallas(adapt_out,
                               adapter_params["weight"],
                               adapter_params["bias"],
                               compute_dtype=compute_dtype,
                               out_dtype=out_dtype)
    return out, adapt_out


# --------------------------------- main ------------------------------------ #

if __name__ == "__main__":
    key = jax.random.PRNGKey(0)
    k_z, k_g, k_a = jax.random.split(key, 3)

    B, Z, H, W = 2, 32, 16, 16
    vig_channels = 32

    z = jax.random.normal(k_z, (B, Z), jnp.float32)
    G_params = make_synthetic_G_params(k_g, Z, H, W)
    adapter_params = make_adapter_params(k_a, vig_channels)

    # Default path: bf16 inputs to the conv kernel, f32 accumulation/output.
    out, adapt_out = generator_wrapper_forward(G_params, adapter_params, z)
    jax.block_until_ready((out, adapt_out))

    assert out.shape == (B, 3, H, W)
    assert adapt_out.shape == (B, vig_channels, H, W)
    assert adapt_out.dtype == jnp.float32

    # Pure-JAX reference for the 1x1 conv.
    _, adapt_pre = synthetic_G(G_params, z)
    ref = jnp.einsum("bchw,oc->bohw", adapt_pre,
                     adapter_params["weight"].reshape(vig_channels, 64)) \
          + adapter_params["bias"][None, :, None, None]

    # bf16-input path: loose tolerance (accumulation is still f32).
    assert jnp.allclose(adapt_out, ref, atol=3e-2, rtol=3e-2)

    # Full-f32 path: tight tolerance.
    _, adapt_out_f32 = generator_wrapper_forward(
        G_params, adapter_params, z, compute_dtype=jnp.float32)
    jax.block_until_ready(adapt_out_f32)
    assert jnp.allclose(adapt_out_f32, ref, atol=1e-5, rtol=1e-5)

    print("KERNEL_OK")
</pallas_src>

<mosaic_0001>
module attributes {stable_mosaic.version = 11 : i64} {
  func.func @_conv1x1_kernel(%arg0: i32, %arg1: i32, %arg2: memref<32x64xbf16, #tpu.memory_space<vmem>>, %arg3: memref<32x1xf32, #tpu.memory_space<vmem>>, %arg4: memref<1x64x128xbf16, #tpu.memory_space<vmem>>, %arg5: memref<1x32x128xf32, #tpu.memory_space<vmem>>) attributes {dimension_semantics = [#tpu.dimension_semantics<parallel>, #tpu.dimension_semantics<parallel>], iteration_bounds = array<i64: 2, 2>, scalar_prefetch = 0 : i64, scratch_operands = 0 : i64, tpu.core_type = #tpu.core_type<tc>, window_params = [{pipeline_mode = #tpu.pipeline_mode<synchronous>, transform_indices = @transform_0, window_bounds = array<i64: 32, 64>}, {pipeline_mode = #tpu.pipeline_mode<synchronous>, transform_indices = @transform_1, window_bounds = array<i64: 32, 1>}, {transform_indices = @transform_2, window_bounds = array<i64: 1, 64, 128>}, {transform_indices = @transform_3, window_bounds = array<i64: 1, 32, 128>}]} {
    %c0 = arith.constant 0 : index
    %c0_0 = arith.constant 0 : index
    %0 = vector.load %arg2[%c0, %c0_0] : memref<32x64xbf16, #tpu.memory_space<vmem>>, vector<32x64xbf16>
    %c0_1 = arith.constant 0 : index
    %c0_2 = arith.constant 0 : index
    %c0_3 = arith.constant 0 : index
    %1 = vector.load %arg4[%c0_1, %c0_2, %c0_3] : memref<1x64x128xbf16, #tpu.memory_space<vmem>>, vector<1x64x128xbf16>
    %2 = vector.shape_cast %1 : vector<1x64x128xbf16> to vector<64x128xbf16>
    %cst = arith.constant dense<0.000000e+00> : vector<32x128xf32>
    %3 = tpu.matmul %0, %2, %cst {dimension_numbers = #tpu.dot_dimension_numbers<[1], [0], [0], [1], [0, 0, 1, 1], [], []>} : vector<32x64xbf16>, vector<64x128xbf16>, vector<32x128xf32> -> vector<32x128xf32>
    %c0_4 = arith.constant 0 : index
    %c0_5 = arith.constant 0 : index
    %4 = vector.load %arg3[%c0_4, %c0_5] : memref<32x1xf32, #tpu.memory_space<vmem>>, vector<32x1xf32>
    %5 = vector.broadcast %4 : vector<32x1xf32> to vector<32x128xf32>
    %6 = arith.addf %3, %5 : vector<32x128xf32>
    %c0_6 = arith.constant 0 : index
    %c0_7 = arith.constant 0 : index
    %c0_8 = arith.constant 0 : index
    %7 = vector.load %arg5[%c0_6, %c0_7, %c0_8] : memref<1x32x128xf32, #tpu.memory_space<vmem>>, vector<1x32x128xf32>
    %8 = vector.shape_cast %7 : vector<1x32x128xf32> to vector<32x128xf32>
    %9 = vector.shape_cast %6 : vector<32x128xf32> to vector<1x32x128xf32>
    tpu.vector_store %arg5[%c0_6, %c0_7, %c0_8], %9 {strides = array<i32>} : memref<1x32x128xf32, #tpu.memory_space<vmem>>, vector<1x32x128xf32>,
    return
  }
  func.func @transform_0(%arg0: i32, %arg1: i32) -> (i32, i32) {
    %c0_i32 = arith.constant 0 : i32
    %c0_i32_0 = arith.constant 0 : i32
    %c0_i32_1 = arith.constant 0 : i32
    return %c0_i32, %c0_i32_0 : i32, i32
  }
  func.func @transform_1(%arg0: i32, %arg1: i32) -> (i32, i32) {
    %c0_i32 = arith.constant 0 : i32
    %c0_i32_0 = arith.constant 0 : i32
    %c0_i32_1 = arith.constant 0 : i32
    return %c0_i32, %c0_i32_0 : i32, i32
  }
  func.func @transform_2(%arg0: i32, %arg1: i32) -> (i32, i32, i32) {
    %c0_i32 = arith.constant 0 : i32
    %c0_i32_0 = arith.constant 0 : i32
    return %arg0, %c0_i32, %arg1 : i32, i32, i32
  }
  func.func @transform_3(%arg0: i32, %arg1: i32) -> (i32, i32, i32) {
    %c0_i32 = arith.constant 0 : i32
    %c0_i32_0 = arith.constant 0 : i32
    return %arg0, %c0_i32, %arg1 : i32, i32, i32
  }
}

</mosaic_0001>

<llo_original>
// kernel: tpu_custom_call.1
$region0: #{tpu_custom_call.1}
  #allocation0 [shape = 'u32[]', space=smem, size = 0x4, offset = 0x4, fixed_abs, tag = 'smem constant byte address 0x4 - core index']
  #allocation1 [shape = 'u32[144,128]{1,0:T(1,128)}', space=vmem, size = 0x12000, scoped, tag = 'internal scratch']
  %s0 = inlined_call_operand.vmem [shape: bf16[32,64], index: 0, kind: input, shape index: {}]
  %s1 = inlined_call_operand.vmem [shape: f32[32,1], index: 1, kind: input, shape index: {}]
  %s2 = inlined_call_operand.hbm [shape: bf16[2,64,256], index: 2, kind: input, shape index: {}]
  %s3 = inlined_call_operand.hbm [shape: f32[2,32,256], index: 3, kind: output, shape index: {}]
  %s4 = sld [smem:[#allocation0]]
  $region49: #{tpu_custom_call.1} parent=0
    _
  %s6 = ssub.s32 1, %s4
  %s7 = scalar_select 0, %s6, %s4
  $region1: #{tpu_custom_call.1} parent=0
    #allocation2 [shape = 'u8[32768]{0}', space=vmem, size = 0x8000, scoped, tag = 'input window, operand 2']
    #allocation3 [shape = 's32[2]{0}', space=sflag, size = 0x8, scoped, tag = 'scoped memory for tpu_custom_call.1']
    #allocation4 [shape = 's32[2]{0}', space=sflag, size = 0x8, scoped, tag = 'scoped memory for tpu_custom_call.1']
    #allocation5 [shape = 'u8[32768]{0}', space=vmem, size = 0x8000, scoped, tag = 'output window, operand 0']
    %8 = vsyncpa [#allocation3], 0
    %s9 = scalar_lea.sflag [#allocation3], 1
    %10 = vsyncpa %s9, 0
    %11 = vsyncpa [#allocation4], 0
    %s12 = scalar_lea.sflag [#allocation4], 1
    %13 = vsyncpa %s12, 0
    loop: start=0, step=1, limit=6
    $region2: #{tpu_custom_call.1} parent=1 // loop_pre_header
      _
    $region3: #{tpu_custom_call.1} parent=1 // loop_header
      %s15 = sphi 0, %s19
      %p16 = scmp.ge.s32.totalorder %s15, 6
      %s22 = sphi 0, %s34
      %s23 = sphi 0, %s30
      %s24 = sphi 0, %s22
      %s25 = sphi 0, %s23
      %s26 = sphi 0, %s24
      %s27 = sphi 0, %s25
      %s35 = sphi 0, %s35
      %s37 = sphi 0, %s35
      %s38 = sphi 0, %s37
      %s52 = sphi 0, %s38
      %s56 = sphi 0, %s56
      %s58 = sphi 0, %s56
      %s59 = sphi 0, %s58
      %s73 = sphi 0, %s59
      %s81 = sphi 0, %s83
      %s84 = sphi 0, %s81
      %s85 = sphi 0, %s84
      %s101 = sphi 0, %s85
      %s109 = sphi 0, %s111
      %s112 = sphi 0, %s109
      %s113 = sphi 0, %s112
      %s129 = sphi 0, %s113
    $region4: #{tpu_custom_call.1} parent=1 // loop_header_branch
      %18 = sbr.rel (%p16) target = $region8
    $region5: #{tpu_custom_call.1} parent=1 // loop_body
      %s20 = ssub.s32 %s15, 1
      %s21 = ssub.s32 %s15, 2
      %s28 = sadd.s32 1, %s23
      %p29 = scmp.ge.s32.totalorder %s28, 2
      %s30 = scalar_select %p29, 0, %s28
      %s31 = sadd.s32 1, %s22
      %s32 = scalar_select %p29, %s31, %s22
      %p33 = scmp.ge.s32.totalorder %s32, 2
      %s34 = scalar_select %p33, 0, %s32
      %s36 = sadd.s32 %s35, 1
      %p39 = scmp.eq.s32.totalorder %s15, 3
      %p40 = scmp.ne.s32.totalorder %s35, %s37
      %p41 = scmp.eq.s32.totalorder %s15, 0
      %p42 = por %p40, %p41
      %p43 = scmp.ne.s32.totalorder %s35, %s37
      %p44 = scmp.eq.s32.totalorder %s20, 3
      %p45 = por %p43, %p44
      %p46 = scmp.ne.s32.totalorder %s37, %s38
      %p47 = scmp.eq.s32.totalorder %s20, 0
      %p48 = por %p46, %p47
      %p49 = scmp.ne.s32.totalorder %s37, %s38
      %p50 = scmp.eq.s32.totalorder %s21, 3
      %p51 = por %p49, %p50
      %p53 = scmp.ne.s32.totalorder %s38, %s52
      %p54 = scmp.eq.s32.totalorder %s21, 0
      %p55 = por %p53, %p54
      %s57 = sadd.s32 %s56, 1
      %p60 = scmp.eq.s32.totalorder %s15, 3
      %p61 = scmp.ne.s32.totalorder %s56, %s58
      %p62 = scmp.eq.s32.totalorder %s15, 0
      %p63 = por %p61, %p62
      %p64 = scmp.ne.s32.totalorder %s56, %s58
      %p65 = scmp.eq.s32.totalorder %s20, 3
      %p66 = por %p64, %p65
      %p67 = scmp.ne.s32.totalorder %s58, %s59
      %p68 = scmp.eq.s32.totalorder %s20, 0
      %p69 = por %p67, %p68
      %p70 = scmp.ne.s32.totalorder %s58, %s59
      %p71 = scmp.eq.s32.totalorder %s21, 3
      %p72 = por %p70, %p71
      %p74 = scmp.ne.s32.totalorder %s59, %s73
      %p75 = scmp.eq.s32.totalorder %s21, 0
      %p76 = por %p74, %p75
      %s77 = ssub.s32 %s22, %s34
      %s78 = ssub.s32 %s23, %s30
      %s79 = sor.u32 %s77, %s78
      %p80 = scmp.eq.s32.totalorder %s79, 0
      %s82 = sadd.s32 %s81, 1
      %s83 = scalar_select %p80, %s81, %s82
      %p86 = pneg %p80
      %p87 = scmp.eq.s32.totalorder %s15, 3
      %p88 = por %p86, %p87
      %p89 = scmp.ne.s32.totalorder %s81, %s84
      %p90 = scmp.eq.s32.totalorder %s15, 0
      %p91 = por %p89, %p90
      %p92 = scmp.ne.s32.totalorder %s81, %s84
      %p93 = scmp.eq.s32.totalorder %s20, 3
      %p94 = por %p92, %p93
      %p95 = scmp.ne.s32.totalorder %s84, %s85
      %p96 = scmp.eq.s32.totalorder %s20, 0
      %p97 = por %p95, %p96
      %p98 = scmp.ne.s32.totalorder %s84, %s85
      %p99 = scmp.eq.s32.totalorder %s21, 3
      %p100 = por %p98, %p99
      %p102 = scmp.ne.s32.totalorder %s85, %s101
      %p103 = scmp.eq.s32.totalorder %s21, 0
      %p104 = por %p102, %p103
      %s105 = ssub.s32 %s22, %s34
      %s106 = ssub.s32 %s23, %s30
      %s107 = sor.u32 %s105, %s106
      %p108 = scmp.eq.s32.totalorder %s107, 0
      %s110 = sadd.s32 %s109, 1
      %s111 = scalar_select %p108, %s109, %s110
      %p114 = pneg %p108
      %p115 = scmp.eq.s32.totalorder %s15, 3
      %p116 = por %p114, %p115
      %p117 = scmp.ne.s32.totalorder %s109, %s112
      %p118 = scmp.eq.s32.totalorder %s15, 0
      %p119 = por %p117, %p118
      %p120 = scmp.ne.s32.totalorder %s109, %s112
      %p121 = scmp.eq.s32.totalorder %s20, 3
      %p122 = por %p120, %p121
      %p123 = scmp.ne.s32.totalorder %s112, %s113
      %p124 = scmp.eq.s32.totalorder %s20, 0
      %p125 = por %p123, %p124
      %p126 = scmp.ne.s32.totalorder %s112, %s113
      %p127 = scmp.eq.s32.totalorder %s21, 3
      %p128 = por %p126, %p127
      %p130 = scmp.ne.s32.totalorder %s113, %s129
      %p131 = scmp.eq.s32.totalorder %s21, 0
      %p132 = por %p130, %p131
      %p133 = scmp.le.s32.totalorder 1, %s15
      %p134 = scmp.lt.s32.totalorder %s15, 5
      %p135 = pnand %p133, %p134
      %p136 = pneg %p135
      // Predicated region
      $region9: #{tpu_custom_call.1} parent=5 // pred_check
        _
      $region10: #{tpu_custom_call.1} parent=5 // pred_check_branch
        %138 = sbr.rel (%p135) target = $region12
      $region11: #{tpu_custom_call.1} parent=5 // pred_region
        %s139 = ssub.s32 %s15, 1
        // Predicated region
        $region13: #{tpu_custom_call.1} parent=11 // pred_check
          %p140 = pneg %p48
        $region14: #{tpu_custom_call.1} parent=11 // pred_check_branch
          %142 = sbr.rel (%p140) target = $region16
        $region15: #{tpu_custom_call.1} parent=11 // pred_region
          _
        $region16: #{tpu_custom_call.1} parent=11 // pred_fallthru
          _
        // Predicated region
        $region17: #{tpu_custom_call.1} parent=11 // pred_check
          %p143 = pneg %p69
        $region18: #{tpu_custom_call.1} parent=11 // pred_check_branch
          %145 = sbr.rel (%p143) target = $region20
        $region19: #{tpu_custom_call.1} parent=11 // pred_region
          _
        $region20: #{tpu_custom_call.1} parent=11 // pred_fallthru
          _
      $region12: #{tpu_custom_call.1} parent=5 // pred_fallthru
        _
      %p146 = scmp.lt.s32.totalorder %s15, 4
      // Predicated region
      $region21: #{tpu_custom_call.1} parent=5 // pred_check
        %p147 = pneg %p146
      $region22: #{tpu_custom_call.1} parent=5 // pred_check_branch
        %149 = sbr.rel (%p147) target = $region24
      $region23: #{tpu_custom_call.1} parent=5 // pred_region
        // Predicated region
        $region25: #{tpu_custom_call.1} parent=23 // pred_check
          %p150 = pneg %p91
        $region26: #{tpu_custom_call.1} parent=23 // pred_check_branch
          %152 = sbr.rel (%p150) target = $region28
        $region27: #{tpu_custom_call.1} parent=23 // pred_region
          %s153 = sand.u32 %s81, 1
          %s154 = scalar_lea.sflag [#allocation3], %s153
          %s155 = sand.u32 %s81, 1
          %s156 = smul.addr %s155, 32
          %s157 = scalar_lea.vmem [#allocation2], %s156
          %s159 = ssub.s32 512, 512
          %160 = vsyncadd %s154, %s159
          %s161 = smul.addr %s22, 16
          %s162 = sadd.s32 %s23, %s161
          %s163 = smul.addr %s162, 64
          %s164 = scalar_lea.hbm %s2, %s163
          %s165 = sshll.u32 %s157, 4
          %s166 = int_to_ptr.vmem [resolvable:$true] %s165
          %171 = dma.hbm_to_vmem [thread:$0]  %s164, 512, %s166, %s154, 128, 64, 4
        $region28: #{tpu_custom_call.1} parent=23 // pred_fallthru
          _
      $region24: #{tpu_custom_call.1} parent=5 // pred_fallthru
        _
      %p172 = scmp.le.s32.totalorder 1, %s15
      %p173 = scmp.lt.s32.totalorder %s15, 5
      %p174 = pnand %p172, %p173
      %p175 = pneg %p174
      // Predicated region
      $region29: #{tpu_custom_call.1} parent=5 // pred_check
        _
      $region30: #{tpu_custom_call.1} parent=5 // pred_check_branch
        %177 = sbr.rel (%p174) target = $region32
      $region31: #{tpu_custom_call.1} parent=5 // pred_region
        %s178 = ssub.s32 %s15, 1
        %s179 = sand.u32 %s84, 1
        %s180 = scalar_lea.sflag [#allocation3], %s179
        %s181 = sand.u32 %s84, 1
        %s182 = smul.addr %s181, 32
        %s183 = scalar_lea.vmem [#allocation2], %s182
        // Predicated region
        $region33: #{tpu_custom_call.1} parent=31 // pred_check
          %p184 = pneg %p97
        $region34: #{tpu_custom_call.1} parent=31 // pred_check_branch
          %186 = sbr.rel (%p184) target = $region36
        $region35: #{tpu_custom_call.1} parent=31 // pred_region
          %187 = dma.done %s180, 512
        $region36: #{tpu_custom_call.1} parent=31 // pred_fallthru
          _
        %p188 = pneg %p48
        %p189 = pneg %p45
        %p190 = pneg %p69
        %p191 = pneg %p66
        %s192 = sand.u32 %s84, 1
        %s193 = scalar_lea.sflag [#allocation3], %s192
        %s194 = sand.u32 %s84, 1
        %s195 = smul.addr %s194, 32
        %s196 = scalar_lea.vmem [#allocation2], %s195
        %p197 = pneg %p97
        %p198 = pneg %p94
        %p199 = pneg %p125
        %p200 = pneg %p122
        %s201 = sand.u32 %s112, 1
        %s202 = scalar_lea.sflag [#allocation4], %s201
        %s203 = sand.u32 %s112, 1
        %s204 = smul.addr %s203, 32
        %s205 = scalar_lea.vmem [#allocation5], %s204
        %v207 = vld [vmem:[%s0] sm:$0xf]
        %v208 = vld [vmem:[%s0 + $0x4] sm:$0xf]
        %v209 = vld [vmem:[%s0 + $0x8] sm:$0xf]
        %v210 = vld [vmem:[%s0 + $0xc] sm:$0xf]
        %v211 = vld [vmem:[%s183] sm:$0xf]
        %v212 = vld [vmem:[%s183 + $0x4] sm:$0xf]
        %v213 = vld [vmem:[%s183 + $0x8] sm:$0xf]
        %v214 = vld [vmem:[%s183 + $0xc] sm:$0xf]
        %v215 = vld [vmem:[%s183 + $0x10] sm:$0xf]
        %v216 = vld [vmem:[%s183 + $0x14] sm:$0xf]
        %v217 = vld [vmem:[%s183 + $0x18] sm:$0xf]
        %v218 = vld [vmem:[%s183 + $0x1c] sm:$0xf]
        %v219 = vld [vmem:[%s1] sm:$0xff]
        %v220 = vld [vmem:[%s1 + $0x8] sm:$0xff]
        %v221 = vld [vmem:[%s1 + $0x10] sm:$0xff]
        %v222 = vld [vmem:[%s1 + $0x18] sm:$0xff]
        %224 = vset.pattern.permute.xlu0 0
        %225 = vperm.xlu0 %224, %v219
        %v226 = vpop.permute.xlu0 %225
        %229 = vset.pattern.permute.xlu0 0
        %230 = vperm.xlu0 %229, %v220
        %v231 = vpop.permute.xlu0 %230
        %234 = vset.pattern.permute.xlu0 0
        %235 = vperm.xlu0 %234, %v221
        %v236 = vpop.permute.xlu0 %235
        %239 = vset.pattern.permute.xlu0 0
        %240 = vperm.xlu0 %239, %v222
        %v241 = vpop.permute.xlu0 %240
        %v247 = vunpack.c.l.b16 %v207
        %v248 = vunpack.c.l.b16 %v208
        %v249 = vunpack.c.l.b16 %v209
        %v250 = vunpack.c.l.b16 %v210
        %v251 = vpack.c.b16 %v248, %v247
        %v252 = vpack.c.b16 %v250, %v249
        %v261 = vunpack.c.l.b16 %v211
        %v262 = vunpack.c.l.b16 %v212
        %v263 = vunpack.c.l.b16 %v213
        %v264 = vunpack.c.l.b16 %v214
        %v265 = vunpack.c.l.b16 %v215
        %v266 = vunpack.c.l.b16 %v216
        %v267 = vunpack.c.l.b16 %v217
        %v268 = vunpack.c.l.b16 %v218
        %v269 = vpack.c.b16 %v262, %v261
        %v270 = vpack.c.b16 %v264, %v263
        %v271 = vpack.c.b16 %v266, %v265
        %v272 = vpack.c.b16 %v268, %v267
        %vm277 = vcmask 523264
        %v279 = vsel %vm277, %v251, 0
        %v282 = vsel %vm277, %v252, 0
        %284 = vmatprep.subr.bf16.mxu0 0
        %285 = vmatpush1.bf16.msra.mxu0 %v269
        %286 = vmatprep.subr.bf16.mxu0 0
        %287 = vmatpush1.bf16.msra.mxu0 %v270
        %288 = vmatprep.subr.bf16.mxu0 0
        %289 = vmatpush1.bf16.msra.mxu0 %v271
        %290 = vmatprep.subr.bf16.mxu0 0
        %291 = vmatpush1.bf16.msra.mxu0 %v272
        %292 = vmatprep.subr.bf16.mxu0 0
        %293 = vmatpush1.bf16.msra.mxu0 0
        %294 = vmatprep.subr.bf16.mxu0 0
        %295 = vmatpush1.bf16.msra.mxu0 0
        %296 = vmatprep.subr.bf16.mxu0 0
        %297 = vmatpush1.bf16.msra.mxu0 0
        %298 = vmatprep.subr.bf16.mxu0 0
        %299 = vmatpush1.bf16.msra.mxu0 0
        %300 = vmatprep.subr.bf16.mxu0 0
        %301 = vmatpush1.bf16.msra.mxu0 0
        %302 = vmatprep.subr.bf16.mxu0 0
        %303 = vmatpush1.bf16.msra.mxu0 0
        %304 = vmatprep.subr.bf16.mxu0 0
        %305 = vmatpush1.bf16.msra.mxu0 0
        %306 = vmatprep.subr.bf16.mxu0 0
        %307 = vmatpush1.bf16.msra.mxu0 0
        %308 = vmatprep.subr.bf16.mxu0 0
        %309 = vmatpush1.bf16.msra.mxu0 0
        %310 = vmatprep.subr.bf16.mxu0 0
        %311 = vmatpush1.bf16.msra.mxu0 0
        %312 = vmatprep.subr.bf16.mxu0 0
        %313 = vmatpush1.bf16.msra.mxu0 0
        %314 = vmatprep.subr.bf16.mxu0 0
        %315 = vmatpush1.bf16.msra.mxu0 0
        %316 = vmatprep.mubr.bf16.mxu0 0
        %317 = vmatmul.mubr.bf16.gmra.mrb[0].mxu0 %v279
        %v318 = vpop.f32.mrb[0].mxu0
        %v319 = vadd.f32 %v226, %v318
        %v320 = vpop.f32.mrb[0].mxu0
        %v321 = vpop.f32.mrb[0].mxu0
        %v322 = vadd.f32 %v231, %v321
        %v323 = vpop.f32.mrb[0].mxu0
        %324 = vmatprep.mubr.bf16.mxu0 0
        %325 = vmatmul.mubr.bf16.gmra.mrb[0].mxu0 %v282
        %v326 = vpop.f32.mrb[0].mxu0
        %v327 = vadd.f32 %v236, %v326
        %v328 = vpop.f32.mrb[0].mxu0
        %v329 = vpop.f32.mrb[0].mxu0
        %v330 = vadd.f32 %v241, %v329
        %v331 = vpop.f32.mrb[0].mxu0
        %332 = vdwg.mxu0
        %333 = vst [vmem:[%s205] sm:$0xff] %v319
        %334 = vst [vmem:[%s205 + $0x8] sm:$0xff] %v322
        %335 = vst [vmem:[%s205 + $0x10] sm:$0xff] %v327
        %336 = vst [vmem:[%s205 + $0x18] sm:$0xff] %v330
        %s337 = sand.u32 %s112, 1
        %s338 = scalar_lea.sflag [#allocation4], %s337
        %s339 = sand.u32 %s112, 1
        %s340 = smul.addr %s339, 32
        %s341 = scalar_lea.vmem [#allocation5], %s340
        // Predicated region
        $region37: #{tpu_custom_call.1} parent=31 // pred_check
          %p342 = pneg %p122
        $region38: #{tpu_custom_call.1} parent=31 // pred_check_branch
          %344 = sbr.rel (%p342) target = $region40
        $region39: #{tpu_custom_call.1} parent=31 // pred_region
          %s346 = ssub.s32 512, 512
          %347 = vsyncadd %s338, %s346
          %s348 = smul.addr %s24, 8
          %s349 = sadd.s32 %s25, %s348
          %s350 = smul.addr %s349, 128
          %s351 = scalar_lea.hbm %s3, %s350
          %s352 = sshll.u32 %s341, 4
          %s353 = int_to_ptr.vmem [resolvable:$true] %s352
          %358 = dma.vmem_to_hbm [thread:$0]  %s353, 512, %s351, %s338, 128, 256, 8
        $region40: #{tpu_custom_call.1} parent=31 // pred_fallthru
          _
      $region32: #{tpu_custom_call.1} parent=5 // pred_fallthru
        _
      %p359 = scmp.le.s32.totalorder 2, %s15
      // Predicated region
      $region41: #{tpu_custom_call.1} parent=5 // pred_check
        %p360 = pneg %p359
      $region42: #{tpu_custom_call.1} parent=5 // pred_check_branch
        %362 = sbr.rel (%p360) target = $region44
      $region43: #{tpu_custom_call.1} parent=5 // pred_region
        %s363 = ssub.s32 %s15, 2
        // Predicated region
        $region45: #{tpu_custom_call.1} parent=43 // pred_check
          %p364 = pneg %p128
        $region46: #{tpu_custom_call.1} parent=43 // pred_check_branch
          %366 = sbr.rel (%p364) target = $region48
        $region47: #{tpu_custom_call.1} parent=43 // pred_region
          %s367 = sand.u32 %s113, 1
          %s368 = scalar_lea.sflag [#allocation4], %s367
          %s369 = sand.u32 %s113, 1
          %s370 = smul.addr %s369, 32
          %s371 = scalar_lea.vmem [#allocation5], %s370
          %372 = dma.done %s368, 512
        $region48: #{tpu_custom_call.1} parent=43 // pred_fallthru
          _
      $region44: #{tpu_custom_call.1} parent=5 // pred_fallthru
        _
    $region6: #{tpu_custom_call.1} parent=1 // loop_footer
      %s19 = sadd.s32 1, %s15
    $region7: #{tpu_custom_call.1} parent=1 // loop_footer_branch
      %14 = sbr.rel target = $region3
    $region8: #{tpu_custom_call.1} parent=1 // loop_exit
      _
    %373 = vsyncpa [#allocation3], 1
    %s374 = scalar_lea.sflag [#allocation3], 1
    %375 = vsyncpa %s374, 1
    %376 = vsyncpa [#allocation4], 1
    %s377 = scalar_lea.sflag [#allocation4], 1
    %378 = vsyncpa %s377, 1

</llo_original>
